<compile_context>
chip_gen: v7x
topology: tpu7x:2x2x1
jax: 0.10.0
libtpu: 0.0.40
codegen_flags: <defaults>
</compile_context>

<pallas_src>
import jax
import jax.numpy as jnp
from jax import lax
from jax.experimental import pallas as pl
from jax.experimental.pallas import tpu as pltpu

LN_EPS = 1e-5   # torch.nn.LayerNorm default
SUBLANE = 8


def _round_up(x, m):
    return (x + m - 1) // m * m


def _pad2d(x, rows, cols):
    r, c = x.shape
    return jnp.pad(x, ((0, rows - r), (0, cols - c)))


# ----------------------------------------------------------------------------
# Parameter init (mirrors the module's uniform ranges). PyTorch stores Linear
# weight as (out, in); we store the transpose (in, out) so the kernel does
# x @ W directly.
# ----------------------------------------------------------------------------
def init_params(key, input_dim, fc1_dims, fc2_dims, n_actions):
    ks = jax.random.split(key, 8)
    f1 = 1.0 / jnp.sqrt(fc1_dims)
    f2 = 1.0 / jnp.sqrt(fc2_dims)
    f3 = 0.003
    f4 = 1.0 / jnp.sqrt(fc2_dims)

    def u(k, shape, f):
        return jax.random.uniform(k, shape, jnp.float32, minval=-f, maxval=f)

    w1 = u(ks[0], (input_dim, fc1_dims), f1)
    b1 = u(ks[1], (1, fc1_dims), f1)
    g1 = jnp.ones((1, fc1_dims), jnp.float32)     # LayerNorm default affine
    be1 = jnp.zeros((1, fc1_dims), jnp.float32)

    w2 = u(ks[2], (fc1_dims, fc2_dims), f2)
    b2 = u(ks[3], (1, fc2_dims), f2)
    g2 = jnp.ones((1, fc2_dims), jnp.float32)
    be2 = jnp.zeros((1, fc2_dims), jnp.float32)

    wa = u(ks[4], (n_actions, fc2_dims), f4)
    ba = u(ks[5], (1, fc2_dims), f4)

    wq = u(ks[6], (fc2_dims, 1), f3)
    bq = u(ks[7], (1, 1), f3)

    return (w1, b1, g1, be1, w2, b2, g2, be2, wa, ba, wq, bq)


# ----------------------------------------------------------------------------
# Host-side packing of all 12 parameter tensors into TWO small slabs
# (done once, reused). Row offsets are multiples of 8 (sublane-aligned), so
# the in-kernel static slices with the *real* K are cheap.
#   weight slab rows: [0,r_in)=W1 | [r_in,r_in+r_f1)=W2 | then WA
#   vector slab rows: b1,g1,be1,b2,g2,be2,ba,wq,bq  (padded to 16 rows)
# ----------------------------------------------------------------------------
def pack_params(params, input_dim, fc1_dims, fc2_dims, n_actions):
    (w1, b1, g1, be1, w2, b2, g2, be2, wa, ba, wq, bq) = params
    r_in = _round_up(input_dim, SUBLANE)
    r_f1 = _round_up(fc1_dims, SUBLANE)
    r_act = _round_up(n_actions, SUBLANE)
    w_cols = max(fc1_dims, fc2_dims)

    w_packed = jnp.concatenate(
        [
            _pad2d(w1, r_in, w_cols),
            _pad2d(w2, r_f1, w_cols),
            _pad2d(wa, r_act, w_cols),
        ],
        axis=0,
    )

    rows = [b1, g1, be1, b2, g2, be2, ba, wq.reshape(1, -1), bq.reshape(1, 1)]
    rows = [_pad2d(r, 1, w_cols) for r in rows]
    n_rows = _round_up(len(rows), SUBLANE)
    vec_packed = jnp.concatenate(
        rows + [jnp.zeros((n_rows - len(rows), w_cols), jnp.float32)], axis=0
    )
    return w_packed, vec_packed


# ----------------------------------------------------------------------------
# Batch-tile sizing: multiple of 8 rows, capped at max_block, and aim for at
# least `min_steps` grid steps so v7x's 2 TensorCores both get work when the
# batch allows it.  Padding waste on the last tile stays small.
# ----------------------------------------------------------------------------
def _choose_block_b(B, *, max_block=1024, min_steps=2):
    b8 = _round_up(max(B, 1), SUBLANE)
    steps = max(min_steps, pl.cdiv(b8, max_block))
    block_b = _round_up(pl.cdiv(B, steps), SUBLANE)
    return min(block_b, b8)


# ----------------------------------------------------------------------------
# Forward pass: one Pallas kernel, batch-gridded, weights resident in VMEM.
# ----------------------------------------------------------------------------
def critic_forward(state, action, w_packed, vec_packed, *,
                   input_dim, fc1_dims, fc2_dims, n_actions, max_block_b=1024):
    B = state.shape[0]
    r_in = _round_up(input_dim, SUBLANE)
    r_f1 = _round_up(fc1_dims, SUBLANE)
    w_rows, w_cols = w_packed.shape
    v_rows = vec_packed.shape[0]

    block_b = _choose_block_b(B, max_block=max_block_b)
    b_pad = _round_up(B, block_b)

    state = state.astype(jnp.float32)
    action = action.astype(jnp.float32)
    if b_pad != B:   # row-only pad (cheap); padded rows are sliced off below
        state = jnp.pad(state, ((0, b_pad - B), (0, 0)))
        action = jnp.pad(action, ((0, b_pad - B), (0, 0)))

    inv_f1 = 1.0 / float(fc1_dims)
    inv_f2 = 1.0 / float(fc2_dims)

    def kernel(s_ref, a_ref, w_ref, vec_ref, out_ref):
        s = s_ref[...]                              # (block_b, input_dim)
        a = a_ref[...]                              # (block_b, n_actions)

        # Real-K slices of the resident weight slab (offsets 8-aligned).
        w1 = w_ref[0:input_dim, 0:fc1_dims]
        w2 = w_ref[r_in:r_in + fc1_dims, 0:fc2_dims]
        wa = w_ref[r_in + r_f1:r_in + r_f1 + n_actions, 0:fc2_dims]

        b1 = vec_ref[0:1, 0:fc1_dims]
        g1 = vec_ref[1:2, 0:fc1_dims]
        be1 = vec_ref[2:3, 0:fc1_dims]
        b2 = vec_ref[3:4, 0:fc2_dims]
        g2 = vec_ref[4:5, 0:fc2_dims]
        be2 = vec_ref[5:6, 0:fc2_dims]
        ba = vec_ref[6:7, 0:fc2_dims]
        wq = vec_ref[7:8, 0:fc2_dims]
        bq = vec_ref[8:9, 0:1]

        def layernorm(xv, gamma, beta, inv_d):
            # Centered two-pass form: matches torch.nn.LayerNorm exactly and
            # avoids E[x^2]-E[x]^2 cancellation.  Extra XLU reduce is free in
            # this memory-bound kernel.
            mu = jnp.sum(xv, axis=-1, keepdims=True) * inv_d
            xc = xv - mu
            var = jnp.sum(xc * xc, axis=-1, keepdims=True) * inv_d
            return xc * lax.rsqrt(var + LN_EPS) * gamma + beta

        # fc1 -> bn1 (LayerNorm) -> relu
        sv = jnp.dot(s, w1, preferred_element_type=jnp.float32) + b1
        sv = jnp.maximum(layernorm(sv, g1, be1, inv_f1), 0.0)

        # fc2 -> bn2 (LayerNorm)   (no relu before the add, per reference)
        sv = jnp.dot(sv, w2, preferred_element_type=jnp.float32) + b2
        sv = layernorm(sv, g2, be2, inv_f2)

        # action branch: plain linear
        av = jnp.dot(a, wa, preferred_element_type=jnp.float32) + ba

        # relu(state_value + action_value) -> q  (VPU mul + XLU reduce,
        # instead of a degenerate N=1 MXU matmul)
        sa = jnp.maximum(sv + av, 0.0)
        q = jnp.sum(sa * wq, axis=-1, keepdims=True) + bq
        out_ref[...] = q.astype(out_ref.dtype)

    grid = (b_pad // block_b,)

    flops = 2 * b_pad * (input_dim * fc1_dims + fc1_dims * fc2_dims
                         + n_actions * fc2_dims + fc2_dims)
    bytes_accessed = 4 * (b_pad * (input_dim + n_actions + 1)
                          + int(w_packed.size) + int(vec_packed.size))
    cost = pl.CostEstimate(flops=int(flops),
                           transcendentals=int(2 * b_pad),
                           bytes_accessed=int(bytes_accessed))

    out = pl.pallas_call(
        kernel,
        out_shape=jax.ShapeDtypeStruct((b_pad, 1), jnp.float32),
        grid_spec=pltpu.PrefetchScalarGridSpec(
            num_scalar_prefetch=0,
            grid=grid,
            in_specs=[
                pl.BlockSpec((block_b, input_dim), lambda i: (i, 0)),
                pl.BlockSpec((block_b, n_actions), lambda i: (i, 0)),
                pl.BlockSpec((w_rows, w_cols), lambda i: (0, 0)),   # resident
                pl.BlockSpec((v_rows, w_cols), lambda i: (0, 0)),   # resident
            ],
            out_specs=pl.BlockSpec((block_b, 1), lambda i: (i, 0)),
        ),
        compiler_params=pltpu.CompilerParams(
            dimension_semantics=("parallel",)),
        cost_estimate=cost,
    )(state, action, w_packed, vec_packed)
    return out[:B]


# ----------------------------------------------------------------------------
# Pure-JAX reference (unpadded f32, torch LayerNorm semantics).
# ----------------------------------------------------------------------------
def reference_forward(state, action, params):
    (w1, b1, g1, be1, w2, b2, g2, be2, wa, ba, wq, bq) = params

    def ln(x, gamma, beta):
        mu = jnp.mean(x, axis=-1, keepdims=True)
        var = jnp.mean((x - mu) * (x - mu), axis=-1, keepdims=True)
        return (x - mu) * lax.rsqrt(var + LN_EPS) * gamma + beta

    sv = state @ w1 + b1
    sv = jnp.maximum(ln(sv, g1, be1), 0.0)
    sv = sv @ w2 + b2
    sv = ln(sv, g2, be2)
    av = action @ wa + ba
    sa = jnp.maximum(sv + av, 0.0)
    return sa @ wq + bq


if __name__ == "__main__":
    batch = 8
    input_dim = 32     # input_dims = (32,)
    fc1_dims = 64
    fc2_dims = 64
    n_actions = 8

    key = jax.random.PRNGKey(0)
    k_state, k_action, k_params = jax.random.split(key, 3)

    state = jax.random.normal(k_state, (batch, input_dim), jnp.float32)
    action = jax.random.normal(k_action, (batch, n_actions), jnp.float32)
    params = init_params(k_params, input_dim, fc1_dims, fc2_dims, n_actions)

    w_packed, vec_packed = pack_params(
        params, input_dim, fc1_dims, fc2_dims, n_actions)

    out = critic_forward(
        state, action, w_packed, vec_packed,
        input_dim=input_dim, fc1_dims=fc1_dims,
        fc2_dims=fc2_dims, n_actions=n_actions)
    out = jax.block_until_ready(out)

    ref = reference_forward(state, action, params)
    assert out.shape == (batch, 1), out.shape
    assert jnp.allclose(out, ref, atol=1e-4, rtol=1e-4), (out, ref)

    print("KERNEL_OK")
</pallas_src>

<mosaic_0001>
module attributes {stable_mosaic.version = 11 : i64} {
  func.func @kernel(%arg0: i32, %arg1: memref<8x32xf32, #tpu.memory_space<vmem>>, %arg2: memref<8x8xf32, #tpu.memory_space<vmem>>, %arg3: memref<104x64xf32, #tpu.memory_space<vmem>>, %arg4: memref<16x64xf32, #tpu.memory_space<vmem>>, %arg5: memref<8x1xf32, #tpu.memory_space<vmem>>) attributes {dimension_semantics = [#tpu.dimension_semantics<parallel>], iteration_bounds = array<i64: 1>, scalar_prefetch = 0 : i64, scratch_operands = 0 : i64, tpu.core_type = #tpu.core_type<tc>, window_params = [{transform_indices = @transform_0, window_bounds = array<i64: 8, 32>}, {transform_indices = @transform_1, window_bounds = array<i64: 8, 8>}, {pipeline_mode = #tpu.pipeline_mode<synchronous>, transform_indices = @transform_2, window_bounds = array<i64: 104, 64>}, {pipeline_mode = #tpu.pipeline_mode<synchronous>, transform_indices = @transform_3, window_bounds = array<i64: 16, 64>}, {transform_indices = @transform_4, window_bounds = array<i64: 8, 1>}]} {
    %c0 = arith.constant 0 : index
    %c0_0 = arith.constant 0 : index
    %0 = vector.load %arg1[%c0, %c0_0] : memref<8x32xf32, #tpu.memory_space<vmem>>, vector<8x32xf32>
    %c0_1 = arith.constant 0 : index
    %c0_2 = arith.constant 0 : index
    %1 = vector.load %arg2[%c0_1, %c0_2] : memref<8x8xf32, #tpu.memory_space<vmem>>, vector<8x8xf32>
    %c0_3 = arith.constant 0 : index
    %c0_4 = arith.constant 0 : index
    %2 = vector.load %arg3[%c0_3, %c0_4] : memref<104x64xf32, #tpu.memory_space<vmem>>, vector<32x64xf32>
    %c32 = arith.constant 32 : index
    %c0_5 = arith.constant 0 : index
    %3 = vector.load %arg3[%c32, %c0_5] : memref<104x64xf32, #tpu.memory_space<vmem>>, vector<64x64xf32>
    %c96 = arith.constant 96 : index
    %c0_6 = arith.constant 0 : index
    %4 = vector.load %arg3[%c96, %c0_6] : memref<104x64xf32, #tpu.memory_space<vmem>>, vector<8x64xf32>
    %c0_7 = arith.constant 0 : index
    %c0_8 = arith.constant 0 : index
    %5 = vector.load %arg4[%c0_7, %c0_8] : memref<16x64xf32, #tpu.memory_space<vmem>>, vector<1x64xf32>
    %c1 = arith.constant 1 : index
    %c0_9 = arith.constant 0 : index
    %6 = vector.load %arg4[%c1, %c0_9] : memref<16x64xf32, #tpu.memory_space<vmem>>, vector<1x64xf32>
    %c2 = arith.constant 2 : index
    %c0_10 = arith.constant 0 : index
    %7 = vector.load %arg4[%c2, %c0_10] : memref<16x64xf32, #tpu.memory_space<vmem>>, vector<1x64xf32>
    %c3 = arith.constant 3 : index
    %c0_11 = arith.constant 0 : index
    %8 = vector.load %arg4[%c3, %c0_11] : memref<16x64xf32, #tpu.memory_space<vmem>>, vector<1x64xf32>
    %c4 = arith.constant 4 : index
    %c0_12 = arith.constant 0 : index
    %9 = vector.load %arg4[%c4, %c0_12] : memref<16x64xf32, #tpu.memory_space<vmem>>, vector<1x64xf32>
    %c5 = arith.constant 5 : index
    %c0_13 = arith.constant 0 : index
    %10 = vector.load %arg4[%c5, %c0_13] : memref<16x64xf32, #tpu.memory_space<vmem>>, vector<1x64xf32>
    %c6 = arith.constant 6 : index
    %c0_14 = arith.constant 0 : index
    %11 = vector.load %arg4[%c6, %c0_14] : memref<16x64xf32, #tpu.memory_space<vmem>>, vector<1x64xf32>
    %c7 = arith.constant 7 : index
    %c0_15 = arith.constant 0 : index
    %12 = vector.load %arg4[%c7, %c0_15] : memref<16x64xf32, #tpu.memory_space<vmem>>, vector<1x64xf32>
    %c8 = arith.constant 8 : index
    %c0_16 = arith.constant 0 : index
    %13 = vector.load %arg4[%c8, %c0_16] : memref<16x64xf32, #tpu.memory_space<vmem>>, vector<1x1xf32>
    %cst = arith.constant dense<0.000000e+00> : vector<8x64xf32>
    %14 = tpu.matmul %0, %2, %cst {dimension_numbers = #tpu.dot_dimension_numbers<[1], [0], [0], [1], [0, 0, 1, 1], [], []>} : vector<8x32xf32>, vector<32x64xf32>, vector<8x64xf32> -> vector<8x64xf32>
    %15 = vector.broadcast %5 : vector<1x64xf32> to vector<8x64xf32>
    %16 = arith.addf %14, %15 : vector<8x64xf32>
    %cst_17 = arith.constant dense<0.000000e+00> : vector<8xf32>
    %17 = vector.multi_reduction <add>, %16, %cst_17 [1] : vector<8x64xf32> to vector<8xf32>
    %18 = vector.shape_cast %17 : vector<8xf32> to vector<8x1xf32>
    %cst_18 = arith.constant 1.562500e-02 : f32
    %19 = vector.broadcast %cst_18 : f32 to vector<8x1xf32>
    %20 = arith.mulf %18, %19 : vector<8x1xf32>
    %21 = vector.broadcast %20 : vector<8x1xf32> to vector<8x64xf32>
    %22 = arith.subf %16, %21 : vector<8x64xf32>
    %23 = arith.mulf %22, %22 : vector<8x64xf32>
    %cst_19 = arith.constant dense<0.000000e+00> : vector<8xf32>
    %24 = vector.multi_reduction <add>, %23, %cst_19 [1] : vector<8x64xf32> to vector<8xf32>
    %25 = vector.shape_cast %24 : vector<8xf32> to vector<8x1xf32>
    %cst_20 = arith.constant 1.562500e-02 : f32
    %26 = vector.broadcast %cst_20 : f32 to vector<8x1xf32>
    %27 = arith.mulf %25, %26 : vector<8x1xf32>
    %cst_21 = arith.constant 9.99999974E-6 : f32
    %28 = vector.broadcast %cst_21 : f32 to vector<8x1xf32>
    %29 = arith.addf %27, %28 : vector<8x1xf32>
    %30 = math.rsqrt %29 : vector<8x1xf32>
    %31 = vector.broadcast %30 : vector<8x1xf32> to vector<8x64xf32>
    %32 = arith.mulf %22, %31 : vector<8x64xf32>
    %33 = vector.broadcast %6 : vector<1x64xf32> to vector<8x64xf32>
    %34 = arith.mulf %32, %33 : vector<8x64xf32>
    %35 = vector.broadcast %7 : vector<1x64xf32> to vector<8x64xf32>
    %36 = arith.addf %34, %35 : vector<8x64xf32>
    %cst_22 = arith.constant 0.000000e+00 : f32
    %37 = vector.broadcast %cst_22 : f32 to vector<8x64xf32>
    %38 = arith.maximumf %36, %37 : vector<8x64xf32>
    %cst_23 = arith.constant dense<0.000000e+00> : vector<8x64xf32>
    %39 = tpu.matmul %38, %3, %cst_23 {dimension_numbers = #tpu.dot_dimension_numbers<[1], [0], [0], [1], [0, 0, 1, 1], [], []>} : vector<8x64xf32>, vector<64x64xf32>, vector<8x64xf32> -> vector<8x64xf32>
    %40 = vector.broadcast %8 : vector<1x64xf32> to vector<8x64xf32>
    %41 = arith.addf %39, %40 : vector<8x64xf32>
    %cst_24 = arith.constant dense<0.000000e+00> : vector<8xf32>
    %42 = vector.multi_reduction <add>, %41, %cst_24 [1] : vector<8x64xf32> to vector<8xf32>
    %43 = vector.shape_cast %42 : vector<8xf32> to vector<8x1xf32>
    %cst_25 = arith.constant 1.562500e-02 : f32
    %44 = vector.broadcast %cst_25 : f32 to vector<8x1xf32>
    %45 = arith.mulf %43, %44 : vector<8x1xf32>
    %46 = vector.broadcast %45 : vector<8x1xf32> to vector<8x64xf32>
    %47 = arith.subf %41, %46 : vector<8x64xf32>
    %48 = arith.mulf %47, %47 : vector<8x64xf32>
    %cst_26 = arith.constant dense<0.000000e+00> : vector<8xf32>
    %49 = vector.multi_reduction <add>, %48, %cst_26 [1] : vector<8x64xf32> to vector<8xf32>
    %50 = vector.shape_cast %49 : vector<8xf32> to vector<8x1xf32>
    %cst_27 = arith.constant 1.562500e-02 : f32
    %51 = vector.broadcast %cst_27 : f32 to vector<8x1xf32>
    %52 = arith.mulf %50, %51 : vector<8x1xf32>
    %cst_28 = arith.constant 9.99999974E-6 : f32
    %53 = vector.broadcast %cst_28 : f32 to vector<8x1xf32>
    %54 = arith.addf %52, %53 : vector<8x1xf32>
    %55 = math.rsqrt %54 : vector<8x1xf32>
    %56 = vector.broadcast %55 : vector<8x1xf32> to vector<8x64xf32>
    %57 = arith.mulf %47, %56 : vector<8x64xf32>
    %58 = vector.broadcast %9 : vector<1x64xf32> to vector<8x64xf32>
    %59 = arith.mulf %57, %58 : vector<8x64xf32>
    %60 = vector.broadcast %10 : vector<1x64xf32> to vector<8x64xf32>
    %61 = arith.addf %59, %60 : vector<8x64xf32>
    %cst_29 = arith.constant dense<0.000000e+00> : vector<8x64xf32>
    %62 = tpu.matmul %1, %4, %cst_29 {dimension_numbers = #tpu.dot_dimension_numbers<[1], [0], [0], [1], [0, 0, 1, 1], [], []>} : vector<8x8xf32>, vector<8x64xf32>, vector<8x64xf32> -> vector<8x64xf32>
    %63 = vector.broadcast %11 : vector<1x64xf32> to vector<8x64xf32>
    %64 = arith.addf %62, %63 : vector<8x64xf32>
    %65 = arith.addf %61, %64 : vector<8x64xf32>
    %cst_30 = arith.constant 0.000000e+00 : f32
    %66 = vector.broadcast %cst_30 : f32 to vector<8x64xf32>
    %67 = arith.maximumf %65, %66 : vector<8x64xf32>
    %68 = vector.broadcast %12 : vector<1x64xf32> to vector<8x64xf32>
    %69 = arith.mulf %67, %68 : vector<8x64xf32>
    %cst_31 = arith.constant dense<0.000000e+00> : vector<8xf32>
    %70 = vector.multi_reduction <add>, %69, %cst_31 [1] : vector<8x64xf32> to vector<8xf32>
    %71 = vector.shape_cast %70 : vector<8xf32> to vector<8x1xf32>
    %72 = vector.broadcast %13 : vector<1x1xf32> to vector<8x1xf32>
    %73 = arith.addf %71, %72 : vector<8x1xf32>
    %c0_32 = arith.constant 0 : index
    %c0_33 = arith.constant 0 : index
    %74 = vector.load %arg5[%c0_32, %c0_33] : memref<8x1xf32, #tpu.memory_space<vmem>>, vector<8x1xf32>
    tpu.vector_store %arg5[%c0_32, %c0_33], %73 {strides = array<i32>} : memref<8x1xf32, #tpu.memory_space<vmem>>, vector<8x1xf32>,
    return
  }
  func.func @transform_0(%arg0: i32) -> (i32, i32) {
    %c0_i32 = arith.constant 0 : i32
    %c0_i32_0 = arith.constant 0 : i32
    return %arg0, %c0_i32 : i32, i32
  }
  func.func @transform_1(%arg0: i32) -> (i32, i32) {
    %c0_i32 = arith.constant 0 : i32
    %c0_i32_0 = arith.constant 0 : i32
    return %arg0, %c0_i32 : i32, i32
  }
  func.func @transform_2(%arg0: i32) -> (i32, i32) {
    %c0_i32 = arith.constant 0 : i32
    %c0_i32_0 = arith.constant 0 : i32
    %c0_i32_1 = arith.constant 0 : i32
    return %c0_i32, %c0_i32_0 : i32, i32
  }
  func.func @transform_3(%arg0: i32) -> (i32, i32) {
    %c0_i32 = arith.constant 0 : i32
    %c0_i32_0 = arith.constant 0 : i32
    %c0_i32_1 = arith.constant 0 : i32
    return %c0_i32, %c0_i32_0 : i32, i32
  }
  func.func @transform_4(%arg0: i32) -> (i32, i32) {
    %c0_i32 = arith.constant 0 : i32
    %c0_i32_0 = arith.constant 0 : i32
    return %arg0, %c0_i32 : i32, i32
  }
}

</mosaic_0001>

<llo_original>
// kernel: tpu_custom_call.1
$region0: #{tpu_custom_call.1}
  #allocation0 [shape = 'u32[]', space=smem, size = 0x4, offset = 0x4, fixed_abs, tag = 'smem constant byte address 0x4 - core index']
  #allocation1 [shape = 'u32[144,128]{1,0:T(1,128)}', space=vmem, size = 0x12000, scoped, tag = 'internal scratch']
  %s0 = inlined_call_operand.vmem [shape: f32[8,32], index: 0, kind: input, shape index: {}]
  %s1 = inlined_call_operand.vmem [shape: f32[8,8], index: 1, kind: input, shape index: {}]
  %s2 = inlined_call_operand.vmem [shape: f32[104,64], index: 2, kind: input, shape index: {}]
  %s3 = inlined_call_operand.vmem [shape: f32[16,64], index: 3, kind: input, shape index: {}]
  %s4 = inlined_call_operand.vmem [shape: f32[8,1], index: 4, kind: output, shape index: {}]
  %s5 = sld [smem:[#allocation0]]
  $region26: #{tpu_custom_call.1} parent=0
    _
  %s7 = ssub.s32 1, %s5
  %s8 = scalar_select 0, %s7, %s5
  // Predicated region
  $region2: #{tpu_custom_call.1} parent=0 // pred_check
    _
  $region3: #{tpu_custom_call.1} parent=0 // pred_check_branch
    %10 = sbr.rel (0) target = $region5
  $region4: #{tpu_custom_call.1} parent=0 // pred_region
    _
  $region5: #{tpu_custom_call.1} parent=0 // pred_fallthru
    _
  // Predicated region
  $region6: #{tpu_custom_call.1} parent=0 // pred_check
    _
  $region7: #{tpu_custom_call.1} parent=0 // pred_check_branch
    %12 = sbr.rel (0) target = $region9
  $region8: #{tpu_custom_call.1} parent=0 // pred_region
    _
  $region9: #{tpu_custom_call.1} parent=0 // pred_fallthru
    _
  // Predicated region
  $region10: #{tpu_custom_call.1} parent=0 // pred_check
    _
  $region11: #{tpu_custom_call.1} parent=0 // pred_check_branch
    %14 = sbr.rel (0) target = $region13
  $region12: #{tpu_custom_call.1} parent=0 // pred_region
    _
  $region13: #{tpu_custom_call.1} parent=0 // pred_fallthru
    _
  // Predicated region
  $region14: #{tpu_custom_call.1} parent=0 // pred_check
    _
  $region15: #{tpu_custom_call.1} parent=0 // pred_check_branch
    %16 = sbr.rel (0) target = $region17
  $region16: #{tpu_custom_call.1} parent=0 // pred_region
    _
  $region17: #{tpu_custom_call.1} parent=0 // pred_fallthru
    _
  %v17 = vld [vmem:[%s0] sm:$0xff]
  %v18 = vld [vmem:[%s1] sm:$0xff]
  %v19 = vld [vmem:[%s2] sm:$0xff]
  %v20 = vld [vmem:[%s2 + $0x8] sm:$0xff]
  %v21 = vld [vmem:[%s2 + $0x10] sm:$0xff]
  %v22 = vld [vmem:[%s2 + $0x18] sm:$0xff]
  %v23 = vld [vmem:[%s2 + $0x20] sm:$0xff]
  %v24 = vld [vmem:[%s2 + $0x28] sm:$0xff]
  %v25 = vld [vmem:[%s2 + $0x30] sm:$0xff]
  %v26 = vld [vmem:[%s2 + $0x38] sm:$0xff]
  %v27 = vld [vmem:[%s2 + $0x40] sm:$0xff]
  %v28 = vld [vmem:[%s2 + $0x48] sm:$0xff]
  %v29 = vld [vmem:[%s2 + $0x50] sm:$0xff]
  %v30 = vld [vmem:[%s2 + $0x58] sm:$0xff]
  %v31 = vld [vmem:[%s2 + $0x60] sm:$0xff]
  %v32 = vld [vmem:[%s3] sm:$0x1]
  %v33 = vld [vmem:[%s3 + $0x1] sm:$0x1]
  %v34 = vld [vmem:[%s3 + $0x2] sm:$0x1]
  %v35 = vld [vmem:[%s3 + $0x3] sm:$0x1]
  %v36 = vld [vmem:[%s3 + $0x4] sm:$0x1]
  %v37 = vld [vmem:[%s3 + $0x5] sm:$0x1]
  %v38 = vld [vmem:[%s3 + $0x6] sm:$0x1]
  %v39 = vld [vmem:[%s3 + $0x7] sm:$0x1]
  %v40 = vld [vmem:[%s3 + $0x8] sm:$0x1]
  %v41 = vlaneseq
  %v42 = vshrl.u32 %v41, 7
  %v43 = vsub.s32 0, %v42
  %v44 = vrot.slane %v32, %v43
  %vm45 = vcmask 261120
  %v47 = vsel %vm45, %v17, 0
  %49 = vmatprep.subr.mxu0 0.0
  %50 = vmatpush1.msra.mxu0 %v19
  %51 = vmatprep.subr.mxu0 0.0
  %52 = vmatpush1.msra.mxu0 %v20
  %53 = vmatprep.subr.mxu0 0.0
  %54 = vmatpush1.msra.mxu0 %v21
  %55 = vmatprep.subr.mxu0 0.0
  %56 = vmatpush1.msra.mxu0 %v22
  %57 = vmatprep.subr.mxu0 0.0
  %58 = vmatpush1.msra.mxu0 0.0
  %59 = vmatprep.subr.mxu0 0.0
  %60 = vmatpush1.msra.mxu0 0.0
  %61 = vmatprep.subr.mxu0 0.0
  %62 = vmatpush1.msra.mxu0 0.0
  %63 = vmatprep.subr.mxu0 0.0
  %64 = vmatpush1.msra.mxu0 0.0
  %65 = vmatprep.subr.mxu0 0.0
  %66 = vmatpush1.msra.mxu0 0.0
  %67 = vmatprep.subr.mxu0 0.0
  %68 = vmatpush1.msra.mxu0 0.0
  %69 = vmatprep.subr.mxu0 0.0
  %70 = vmatpush1.msra.mxu0 0.0
  %71 = vmatprep.subr.mxu0 0.0
  %72 = vmatpush1.msra.mxu0 0.0
  %73 = vmatprep.subr.mxu0 0.0
  %74 = vmatpush1.msra.mxu0 0.0
  %75 = vmatprep.subr.mxu0 0.0
  %76 = vmatpush1.msra.mxu0 0.0
  %77 = vmatprep.subr.mxu0 0.0
  %78 = vmatpush1.msra.mxu0 0.0
  %79 = vmatprep.subr.mxu0 0.0
  %80 = vmatpush1.msra.mxu0 0.0
  %81 = vmatprep.subr.mxu0 0.0
  %82 = vmatpush1.msra.mxu0 0.0
  %83 = vmatprep.subr.mxu0 0.0
  %84 = vmatpush1.msra.mxu0 0.0
  %85 = vmatprep.subr.mxu0 0.0
  %86 = vmatpush1.msra.mxu0 0.0
  %87 = vmatprep.subr.mxu0 0.0
  %88 = vmatpush1.msra.mxu0 0.0
  %89 = vmatprep.subr.mxu0 0.0
  %90 = vmatpush1.msra.mxu0 0.0
  %91 = vmatprep.subr.mxu0 0.0
  %92 = vmatpush1.msra.mxu0 0.0
  %93 = vmatprep.subr.mxu0 0.0
  %94 = vmatpush1.msra.mxu0 0.0
  %95 = vmatprep.subr.mxu0 0.0
  %96 = vmatpush1.msra.mxu0 0.0
  %97 = vmatprep.subr.mxu0 0.0
  %98 = vmatpush1.msra.mxu0 0.0
  %99 = vmatprep.subr.mxu0 0.0
  %100 = vmatpush1.msra.mxu0 0.0
  %101 = vmatprep.subr.mxu0 0.0
  %102 = vmatpush1.msra.mxu0 0.0
  %103 = vmatprep.subr.mxu0 0.0
  %104 = vmatpush1.msra.mxu0 0.0
  %105 = vmatprep.subr.mxu0 0.0
  %106 = vmatpush1.msra.mxu0 0.0
  %107 = vmatprep.subr.mxu0 0.0
  %108 = vmatpush1.msra.mxu0 0.0
  %109 = vmatprep.subr.mxu0 0.0
  %110 = vmatpush1.msra.mxu0 0.0
  %111 = vmatprep.subr.mxu0 0.0
  %112 = vmatpush1.msra.mxu0 0.0
  %113 = vmatprep.mubr.f32.mxu0 0.0
  %114 = vmatmul.mubr.f32.gmra.mrb[0].mxu0 %v47
  %v115 = vpop.f32.mrb[0].mxu0
  %v116 = vadd.f32 %v44, %v115
  %v117 = vpop.f32.mrb[0].mxu0
  %118 = vdwg.mxu0
  %vm119 = vcmask 523264
  %v120 = vsel %vm119, %v116, 0.0
  %121 = vadd.xlane.f32.xlu0 %v120
  %v122 = vpop.xlane.xlu0 %121
  %v123 = vmul.f32 %v122, 0.015625
  %v124 = vsub.f32 %v116, %v123
  %v125 = vmul.f32 %v124, %v124
  %v126 = vsel %vm119, %v125, 0.0
  %127 = vadd.xlane.f32.xlu0 %v126
  %v128 = vpop.xlane.xlu0 %127
  %v129 = vmul.f32 %v128, 0.015625
  %v130 = vadd.f32 %v129, 1e-05
  %v131 = vrsqrt.pop %v130
  %v132 = vmul.f32 %v124, %v131
  %v133 = vlaneseq
  %v134 = vshrl.u32 %v133, 7
  %v135 = vsub.s32 0, %v134
  %v136 = vrot.slane %v33, %v135
  %v137 = vmul.f32 %v132, %v136
  %v138 = vlaneseq
  %v139 = vshrl.u32 %v138, 7
  %v140 = vsub.s32 0, %v139
  %v141 = vrot.slane %v34, %v140
  %v142 = vadd.f32 %v137, %v141
  %v143 = vmax.f32 %v142, 0.0
  %v144 = vlaneseq
  %v145 = vshrl.u32 %v144, 7
  %v146 = vsub.s32 0, %v145
  %v147 = vrot.slane %v35, %v146
  %v149 = vsel %vm119, %v143, 0
  %151 = vmatprep.subr.mxu0 0.0
  %152 = vmatpush1.msra.mxu0 %v23
  %153 = vmatprep.subr.mxu0 0.0
  %154 = vmatpush1.msra.mxu0 %v24
  %155 = vmatprep.subr.mxu0 0.0
  %156 = vmatpush1.msra.mxu0 %v25
  %157 = vmatprep.subr.mxu0 0.0
  %158 = vmatpush1.msra.mxu0 %v26
  %159 = vmatprep.subr.mxu0 0.0
  %160 = vmatpush1.msra.mxu0 %v27
  %161 = vmatprep.subr.mxu0 0.0
  %162 = vmatpush1.msra.mxu0 %v28
  %163 = vmatprep.subr.mxu0 0.0
  %164 = vmatpush1.msra.mxu0 %v29
  %165 = vmatprep.subr.mxu0 0.0
  %166 = vmatpush1.msra.mxu0 %v30
  %167 = vmatprep.subr.mxu0 0.0
  %168 = vmatpush1.msra.mxu0 0.0
  %169 = vmatprep.subr.mxu0 0.0
  %170 = vmatpush1.msra.mxu0 0.0
  %171 = vmatprep.subr.mxu0 0.0
  %172 = vmatpush1.msra.mxu0 0.0
  %173 = vmatprep.subr.mxu0 0.0
  %174 = vmatpush1.msra.mxu0 0.0
  %175 = vmatprep.subr.mxu0 0.0
  %176 = vmatpush1.msra.mxu0 0.0
  %177 = vmatprep.subr.mxu0 0.0
  %178 = vmatpush1.msra.mxu0 0.0
  %179 = vmatprep.subr.mxu0 0.0
  %180 = vmatpush1.msra.mxu0 0.0
  %181 = vmatprep.subr.mxu0 0.0
  %182 = vmatpush1.msra.mxu0 0.0
  %183 = vmatprep.subr.mxu0 0.0
  %184 = vmatpush1.msra.mxu0 0.0
  %185 = vmatprep.subr.mxu0 0.0
  %186 = vmatpush1.msra.mxu0 0.0
  %187 = vmatprep.subr.mxu0 0.0
  %188 = vmatpush1.msra.mxu0 0.0
  %189 = vmatprep.subr.mxu0 0.0
  %190 = vmatpush1.msra.mxu0 0.0
  %191 = vmatprep.subr.mxu0 0.0
  %192 = vmatpush1.msra.mxu0 0.0
  %193 = vmatprep.subr.mxu0 0.0
  %194 = vmatpush1.msra.mxu0 0.0
  %195 = vmatprep.subr.mxu0 0.0
  %196 = vmatpush1.msra.mxu0 0.0
  %197 = vmatprep.subr.mxu0 0.0
  %198 = vmatpush1.msra.mxu0 0.0
  %199 = vmatprep.subr.mxu0 0.0
  %200 = vmatpush1.msra.mxu0 0.0
  %201 = vmatprep.subr.mxu0 0.0
  %202 = vmatpush1.msra.mxu0 0.0
  %203 = vmatprep.subr.mxu0 0.0
  %204 = vmatpush1.msra.mxu0 0.0
  %205 = vmatprep.subr.mxu0 0.0
  %206 = vmatpush1.msra.mxu0 0.0
  %207 = vmatprep.subr.mxu0 0.0
  %208 = vmatpush1.msra.mxu0 0.0
  %209 = vmatprep.subr.mxu0 0.0
  %210 = vmatpush1.msra.mxu0 0.0
  %211 = vmatprep.subr.mxu0 0.0
  %212 = vmatpush1.msra.mxu0 0.0
  %213 = vmatprep.subr.mxu0 0.0
  %214 = vmatpush1.msra.mxu0 0.0
  %215 = vmatprep.mubr.f32.mxu0 0.0
  %216 = vmatmul.mubr.f32.gmra.mrb[0].mxu0 %v149
  %v217 = vpop.f32.mrb[0].mxu0
  %v218 = vadd.f32 %v147, %v217
  %v219 = vpop.f32.mrb[0].mxu0
  %220 = vdwg.mxu0
  %v221 = vsel %vm119, %v218, 0.0
  %222 = vadd.xlane.f32.xlu0 %v221
  %v223 = vpop.xlane.xlu0 %222
  %v224 = vmul.f32 %v223, 0.015625
  %v225 = vsub.f32 %v218, %v224
  %v226 = vmul.f32 %v225, %v225
  %v227 = vsel %vm119, %v226, 0.0
  %228 = vadd.xlane.f32.xlu0 %v227
  %v229 = vpop.xlane.xlu0 %228
  %v230 = vmul.f32 %v229, 0.015625
  %v231 = vadd.f32 %v230, 1e-05
  %v232 = vrsqrt.pop %v231
  %v233 = vmul.f32 %v225, %v232
  %v234 = vlaneseq
  %v235 = vshrl.u32 %v234, 7
  %v236 = vsub.s32 0, %v235
  %v237 = vrot.slane %v36, %v236
  %v238 = vmul.f32 %v233, %v237
  %v239 = vlaneseq
  %v240 = vshrl.u32 %v239, 7
  %v241 = vsub.s32 0, %v240
  %v242 = vrot.slane %v37, %v241
  %v243 = vadd.f32 %v238, %v242
  %v244 = vlaneseq
  %v245 = vshrl.u32 %v244, 7
  %v246 = vsub.s32 0, %v245
  %v247 = vrot.slane %v38, %v246
  %vm248 = vcmask 64512
  %v250 = vsel %vm248, %v18, 0
  %252 = vmatprep.subr.mxu0 0.0
  %253 = vmatpush1.msra.mxu0 %v31
  %254 = vmatprep.subr.mxu0 0.0
  %255 = vmatpush1.msra.mxu0 0.0
  %256 = vmatprep.subr.mxu0 0.0
  %257 = vmatpush1.msra.mxu0 0.0
  %258 = vmatprep.subr.mxu0 0.0
  %259 = vmatpush1.msra.mxu0 0.0
  %260 = vmatprep.subr.mxu0 0.0
  %261 = vmatpush1.msra.mxu0 0.0
  %262 = vmatprep.subr.mxu0 0.0
  %263 = vmatpush1.msra.mxu0 0.0
  %264 = vmatprep.subr.mxu0 0.0
  %265 = vmatpush1.msra.mxu0 0.0
  %266 = vmatprep.subr.mxu0 0.0
  %267 = vmatpush1.msra.mxu0 0.0
  %268 = vmatprep.subr.mxu0 0.0
  %269 = vmatpush1.msra.mxu0 0.0
  %270 = vmatprep.subr.mxu0 0.0
  %271 = vmatpush1.msra.mxu0 0.0
  %272 = vmatprep.subr.mxu0 0.0
  %273 = vmatpush1.msra.mxu0 0.0
  %274 = vmatprep.subr.mxu0 0.0
  %275 = vmatpush1.msra.mxu0 0.0
  %276 = vmatprep.subr.mxu0 0.0
  %277 = vmatpush1.msra.mxu0 0.0
  %278 = vmatprep.subr.mxu0 0.0
  %279 = vmatpush1.msra.mxu0 0.0
  %280 = vmatprep.subr.mxu0 0.0
  %281 = vmatpush1.msra.mxu0 0.0
  %282 = vmatprep.subr.mxu0 0.0
  %283 = vmatpush1.msra.mxu0 0.0
  %284 = vmatprep.subr.mxu0 0.0
  %285 = vmatpush1.msra.mxu0 0.0
  %286 = vmatprep.subr.mxu0 0.0
  %287 = vmatpush1.msra.mxu0 0.0
  %288 = vmatprep.subr.mxu0 0.0
  %289 = vmatpush1.msra.mxu0 0.0
  %290 = vmatprep.subr.mxu0 0.0
  %291 = vmatpush1.msra.mxu0 0.0
  %292 = vmatprep.subr.mxu0 0.0
  %293 = vmatpush1.msra.mxu0 0.0
  %294 = vmatprep.subr.mxu0 0.0
  %295 = vmatpush1.msra.mxu0 0.0
  %296 = vmatprep.subr.mxu0 0.0
  %297 = vmatpush1.msra.mxu0 0.0
  %298 = vmatprep.subr.mxu0 0.0
  %299 = vmatpush1.msra.mxu0 0.0
  %300 = vmatprep.subr.mxu0 0.0
  %301 = vmatpush1.msra.mxu0 0.0
  %302 = vmatprep.subr.mxu0 0.0
  %303 = vmatpush1.msra.mxu0 0.0
  %304 = vmatprep.subr.mxu0 0.0
  %305 = vmatpush1.msra.mxu0 0.0
  %306 = vmatprep.subr.mxu0 0.0
  %307 = vmatpush1.msra.mxu0 0.0
  %308 = vmatprep.subr.mxu0 0.0
  %309 = vmatpush1.msra.mxu0 0.0
  %310 = vmatprep.subr.mxu0 0.0
  %311 = vmatpush1.msra.mxu0 0.0
  %312 = vmatprep.subr.mxu0 0.0
  %313 = vmatpush1.msra.mxu0 0.0
  %314 = vmatprep.subr.mxu0 0.0
  %315 = vmatpush1.msra.mxu0 0.0
  %316 = vmatprep.mubr.f32.mxu0 0.0
  %317 = vmatmul.mubr.f32.gmra.mrb[0].mxu0 %v250
  %v318 = vpop.f32.mrb[0].mxu0
  %v319 = vadd.f32 %v247, %v318
  %v320 = vpop.f32.mrb[0].mxu0
  %321 = vdwg.mxu0
  %v322 = vadd.f32 %v243, %v319
  %v323 = vmax.f32 %v322, 0.0
  %v324 = vlaneseq
  %v325 = vshrl.u32 %v324, 7
  %v326 = vsub.s32 0, %v325
  %v327 = vrot.slane %v39, %v326
  %v328 = vmul.f32 %v323, %v327
  %v329 = vsel %vm119, %v328, 0.0
  %330 = vadd.xlane.f32.xlu0 %v329
  %v331 = vpop.xlane.xlu0 %330
  %v332 = vlaneseq
  %v333 = vshrl.u32 %v332, 7
  %v334 = vsub.s32 0, %v333
  %v335 = vrot.slane %v40, %v334
  %v336 = vadd.f32 %v331, %v335
  %vm337 = vcmask 7168
  %338 = vst.msk [vmem:[%s4] sm:$0xff] %vm337, %v336
  // Predicated region
  $region18: #{tpu_custom_call.1} parent=0 // pred_check
    _
  $region19: #{tpu_custom_call.1} parent=0 // pred_check_branch
    %340 = sbr.rel (0) target = $region21
  $region20: #{tpu_custom_call.1} parent=0 // pred_region
    _
  $region21: #{tpu_custom_call.1} parent=0 // pred_fallthru
    _
  // Predicated region
  $region22: #{tpu_custom_call.1} parent=0 // pred_check
    _
  $region23: #{tpu_custom_call.1} parent=0 // pred_check_branch
    %342 = sbr.rel (0) target = $region25
  $region24: #{tpu_custom_call.1} parent=0 // pred_region
    _
  $region25: #{tpu_custom_call.1} parent=0 // pred_fallthru
    _

</llo_original>
